<compile_context>
chip_gen: v5e
topology: v5e:2x2
jax: 0.10.0
libtpu: 0.0.40
codegen_flags: <defaults>
</compile_context>

<pallas_src>
import math

import jax
import jax.numpy as jnp
from jax.experimental import pallas as pl
from jax.experimental.pallas import tpu as pltpu

_LANE = 128


def _round_up(n, m):
    return ((n + m - 1) // m) * m


def _policy_kernel(x_ref, w1_ref, b1_ref, w2_ref, b2_ref, mean_ref):
    # fc1: MXU matmul with f32 accumulation, bias add + relu in f32 on the VPU.
    h = jnp.dot(x_ref[...], w1_ref[...], preferred_element_type=jnp.float32)
    h = jnp.maximum(h + b1_ref[...], 0.0)
    # fc2_mean: cast h to the weight compute dtype (no-op for f32), accumulate f32.
    m = jnp.dot(h.astype(w2_ref.dtype), w2_ref[...],
                preferred_element_type=jnp.float32)
    mean_ref[...] = (m + b2_ref[...]).astype(mean_ref.dtype)


def policy_forward(x, w1, b1, w2, b2, *, action_space,
                   compute_dtype=jnp.float32):
    """Compute action_mean = fc2_mean(relu(fc1(x))) with a fused Pallas kernel.

    x  : [B, S]        float32
    w1 : [S, Hp]       float32, Hp = hidden padded to 128 lanes
    b1 : [1, Hp]       float32
    w2 : [Hp, Ap]      float32, Ap = action_space padded to 128 lanes
    b2 : [1, Ap]       float32
    returns action_mean : [B, action_space] float32
    """
    B, S = x.shape
    Hp = w1.shape[1]
    Ap = w2.shape[1]

    # Batch tiling: single step for small batches, 256-row tiles otherwise.
    if B <= 256:
        TB = _round_up(max(B, 1), 8)
    else:
        TB = 256
    B_pad = _round_up(B, TB)

    xc = x.astype(compute_dtype)
    if B_pad != B:
        xc = jnp.pad(xc, ((0, B_pad - B), (0, 0)))
    w1c = w1.astype(compute_dtype)
    w2c = w2.astype(compute_dtype)

    grid = (pl.cdiv(B_pad, TB),)

    mean_pad = pl.pallas_call(
        _policy_kernel,
        out_shape=jax.ShapeDtypeStruct((B_pad, Ap), jnp.float32),
        grid=grid,
        in_specs=[
            pl.BlockSpec((TB, S), lambda i: (i, 0)),     # x: tiled over batch
            pl.BlockSpec((S, Hp), lambda i: (0, 0)),     # w1: resident in VMEM
            pl.BlockSpec((1, Hp), lambda i: (0, 0)),     # b1: resident
            pl.BlockSpec((Hp, Ap), lambda i: (0, 0)),    # w2: resident
            pl.BlockSpec((1, Ap), lambda i: (0, 0)),     # b2: resident
        ],
        out_specs=pl.BlockSpec((TB, Ap), lambda i: (i, 0)),
        compiler_params=pltpu.CompilerParams(
            dimension_semantics=("parallel",),           # megacore on v7x
            vmem_limit_bytes=32 * 1024 * 1024,           # safe on v5e/v6e/v7x
        ),
    )(xc, w1c, b1, w2c, b2)

    return mean_pad[:B, :action_space]


class PolicyPallas:
    """JAX/Pallas mirror of the PyTorch Policy module."""

    def __init__(self, state_space, action_space, key, hidden=64):
        self.state_space = state_space
        self.action_space = action_space
        self.hidden = hidden
        self.sigmasquared = 5

        self.hidden_pad = _round_up(hidden, _LANE)
        self.action_pad = _round_up(action_space, _LANE)

        k1, k2 = jax.random.split(key)
        # init_weights(): torch.nn.init.normal_(weight) -> N(0, 1); bias -> 0.
        # Stored transposed ([in, out]) so the kernel does plain `x @ W`, and
        # zero-padded to lane-dense (128) widths once here (padding columns /
        # rows are zero, so relu(0)=0 and zero rows add nothing to the dot:
        # the math is unchanged).
        w1 = jax.random.normal(k1, (state_space, hidden), jnp.float32)
        w2 = jax.random.normal(k2, (hidden, action_space), jnp.float32)
        self._w1_ref = w1   # unpadded copies kept only for testing
        self._w2_ref = w2
        self.w1 = jnp.pad(w1, ((0, 0), (0, self.hidden_pad - hidden)))
        self.b1 = jnp.zeros((1, self.hidden_pad), jnp.float32)
        self.w2 = jnp.pad(w2, ((0, self.hidden_pad - hidden),
                               (0, self.action_pad - action_space)))
        self.b2 = jnp.zeros((1, self.action_pad), jnp.float32)

    def forward(self, x, episode_number=0, compute_dtype=jnp.float32):
        # Use compute_dtype=jnp.bfloat16 for large MXU-bound batches on v6e/v7x.
        action_mean = policy_forward(
            x, self.w1, self.b1, self.w2, self.b2,
            action_space=self.action_space, compute_dtype=compute_dtype)
        # Constant scalar std-dev; not materialised as a [B, A] HBM array.
        sigma = jnp.float32(math.sqrt(self.sigmasquared))
        # TODO(synk): torch.distributions.Normal has no Pallas equivalent; the
        # distribution is represented by (mean, sigma). episode_number is
        # unused, matching the reference forward().
        return action_mean, sigma


if __name__ == "__main__":
    key = jax.random.PRNGKey(0)
    k_params, k_x, k_xb = jax.random.split(key, 3)

    state_space = 8
    action_space = 2
    batch = 2

    policy = PolicyPallas(state_space, action_space, k_params)

    # Small demo batch (single grid step).
    x = jax.random.normal(k_x, (batch, state_space), jnp.float32)
    action_mean, sigma = policy.forward(x)
    jax.block_until_ready(action_mean)
    jax.block_until_ready(sigma)

    h_ref = jnp.maximum(x @ policy._w1_ref, 0.0)          # biases are zero-init
    mean_ref = h_ref @ policy._w2_ref
    assert action_mean.shape == (batch, action_space)
    assert jnp.allclose(action_mean, mean_ref, atol=1e-5, rtol=1e-5)
    assert abs(float(sigma) - math.sqrt(5)) < 1e-6

    # Larger batch: exercises batch padding + multi-step pipelined grid with
    # resident weights and lane-dense stores.
    xb = jax.random.normal(k_xb, (300, state_space), jnp.float32)
    mean_b, _ = policy.forward(xb)
    jax.block_until_ready(mean_b)
    ref_b = jnp.maximum(xb @ policy._w1_ref, 0.0) @ policy._w2_ref
    assert mean_b.shape == (300, action_space)
    assert jnp.allclose(mean_b, ref_b, atol=1e-4, rtol=1e-4)

    print("KERNEL_OK")
</pallas_src>

<mosaic_0001>
module attributes {stable_mosaic.version = 11 : i64} {
  func.func @_policy_kernel(%arg0: i32, %arg1: memref<8x8xf32, #tpu.memory_space<vmem>>, %arg2: memref<8x128xf32, #tpu.memory_space<vmem>>, %arg3: memref<1x128xf32, #tpu.memory_space<vmem>>, %arg4: memref<128x128xf32, #tpu.memory_space<vmem>>, %arg5: memref<1x128xf32, #tpu.memory_space<vmem>>, %arg6: memref<8x128xf32, #tpu.memory_space<vmem>>) attributes {dimension_semantics = [#tpu.dimension_semantics<parallel>], iteration_bounds = array<i64: 1>, scalar_prefetch = 0 : i64, scratch_operands = 0 : i64, tpu.core_type = #tpu.core_type<tc>, window_params = [{transform_indices = @transform_0, window_bounds = array<i64: 8, 8>}, {pipeline_mode = #tpu.pipeline_mode<synchronous>, transform_indices = @transform_1, window_bounds = array<i64: 8, 128>}, {pipeline_mode = #tpu.pipeline_mode<synchronous>, transform_indices = @transform_2, window_bounds = array<i64: 1, 128>}, {pipeline_mode = #tpu.pipeline_mode<synchronous>, transform_indices = @transform_3, window_bounds = array<i64: 128, 128>}, {pipeline_mode = #tpu.pipeline_mode<synchronous>, transform_indices = @transform_4, window_bounds = array<i64: 1, 128>}, {transform_indices = @transform_5, window_bounds = array<i64: 8, 128>}]} {
    %c0 = arith.constant 0 : index
    %c0_0 = arith.constant 0 : index
    %0 = vector.load %arg1[%c0, %c0_0] : memref<8x8xf32, #tpu.memory_space<vmem>>, vector<8x8xf32>
    %c0_1 = arith.constant 0 : index
    %c0_2 = arith.constant 0 : index
    %1 = vector.load %arg2[%c0_1, %c0_2] : memref<8x128xf32, #tpu.memory_space<vmem>>, vector<8x128xf32>
    %cst = arith.constant dense<0.000000e+00> : vector<8x128xf32>
    %2 = tpu.matmul %0, %1, %cst {dimension_numbers = #tpu.dot_dimension_numbers<[1], [0], [0], [1], [0, 0, 1, 1], [], []>} : vector<8x8xf32>, vector<8x128xf32>, vector<8x128xf32> -> vector<8x128xf32>
    %c0_3 = arith.constant 0 : index
    %c0_4 = arith.constant 0 : index
    %3 = vector.load %arg3[%c0_3, %c0_4] : memref<1x128xf32, #tpu.memory_space<vmem>>, vector<1x128xf32>
    %4 = vector.broadcast %3 : vector<1x128xf32> to vector<8x128xf32>
    %5 = arith.addf %2, %4 : vector<8x128xf32>
    %cst_5 = arith.constant 0.000000e+00 : f32
    %6 = vector.broadcast %cst_5 : f32 to vector<8x128xf32>
    %7 = arith.maximumf %5, %6 : vector<8x128xf32>
    %c0_6 = arith.constant 0 : index
    %c0_7 = arith.constant 0 : index
    %8 = vector.load %arg4[%c0_6, %c0_7] : memref<128x128xf32, #tpu.memory_space<vmem>>, vector<128x128xf32>
    %cst_8 = arith.constant dense<0.000000e+00> : vector<8x128xf32>
    %9 = tpu.matmul %7, %8, %cst_8 {dimension_numbers = #tpu.dot_dimension_numbers<[1], [0], [0], [1], [0, 0, 1, 1], [], []>} : vector<8x128xf32>, vector<128x128xf32>, vector<8x128xf32> -> vector<8x128xf32>
    %c0_9 = arith.constant 0 : index
    %c0_10 = arith.constant 0 : index
    %10 = vector.load %arg5[%c0_9, %c0_10] : memref<1x128xf32, #tpu.memory_space<vmem>>, vector<1x128xf32>
    %11 = vector.broadcast %10 : vector<1x128xf32> to vector<8x128xf32>
    %12 = arith.addf %9, %11 : vector<8x128xf32>
    %c0_11 = arith.constant 0 : index
    %c0_12 = arith.constant 0 : index
    %13 = vector.load %arg6[%c0_11, %c0_12] : memref<8x128xf32, #tpu.memory_space<vmem>>, vector<8x128xf32>
    tpu.vector_store %arg6[%c0_11, %c0_12], %12 {strides = array<i32>} : memref<8x128xf32, #tpu.memory_space<vmem>>, vector<8x128xf32>,
    return
  }
  func.func @transform_0(%arg0: i32) -> (i32, i32) {
    %c0_i32 = arith.constant 0 : i32
    %c0_i32_0 = arith.constant 0 : i32
    return %arg0, %c0_i32 : i32, i32
  }
  func.func @transform_1(%arg0: i32) -> (i32, i32) {
    %c0_i32 = arith.constant 0 : i32
    %c0_i32_0 = arith.constant 0 : i32
    %c0_i32_1 = arith.constant 0 : i32
    return %c0_i32, %c0_i32_0 : i32, i32
  }
  func.func @transform_2(%arg0: i32) -> (i32, i32) {
    %c0_i32 = arith.constant 0 : i32
    %c0_i32_0 = arith.constant 0 : i32
    %c0_i32_1 = arith.constant 0 : i32
    return %c0_i32, %c0_i32_0 : i32, i32
  }
  func.func @transform_3(%arg0: i32) -> (i32, i32) {
    %c0_i32 = arith.constant 0 : i32
    %c0_i32_0 = arith.constant 0 : i32
    %c0_i32_1 = arith.constant 0 : i32
    return %c0_i32, %c0_i32_0 : i32, i32
  }
  func.func @transform_4(%arg0: i32) -> (i32, i32) {
    %c0_i32 = arith.constant 0 : i32
    %c0_i32_0 = arith.constant 0 : i32
    %c0_i32_1 = arith.constant 0 : i32
    return %c0_i32, %c0_i32_0 : i32, i32
  }
  func.func @transform_5(%arg0: i32) -> (i32, i32) {
    %c0_i32 = arith.constant 0 : i32
    %c0_i32_0 = arith.constant 0 : i32
    return %arg0, %c0_i32 : i32, i32
  }
}

</mosaic_0001>

<llo_original>
// kernel: tpu_custom_call.1
$region0: #{tpu_custom_call.1}
  #allocation0 [shape = 'u32[]', space=smem, size = 0x4, offset = 0x4, fixed_abs, tag = 'smem constant byte address 0x4 - core index']
  #allocation1 [shape = 'u32[72,128]{1,0:T(1,128)}', space=vmem, size = 0x9000, scoped, tag = 'internal scratch']
  %s0 = inlined_call_operand.hbm [shape: f32[8,8], index: 0, kind: input, shape index: {}]
  %s1 = inlined_call_operand.hbm [shape: f32[8,128], index: 1, kind: input, shape index: {}]
  %s2 = inlined_call_operand.vmem [shape: f32[1,128], index: 2, kind: input, shape index: {}]
  %s3 = inlined_call_operand.hbm [shape: f32[128,128], index: 3, kind: input, shape index: {}]
  %s4 = inlined_call_operand.vmem [shape: f32[1,128], index: 4, kind: input, shape index: {}]
  %s5 = inlined_call_operand.hbm [shape: f32[8,128], index: 5, kind: output, shape index: {}]
  %s6 = sld [smem:[#allocation0]]
  $region42: #{tpu_custom_call.1} parent=0
    _
  %s8 = ssub.s32 1, %s6
  %s9 = scalar_select 0, %s8, %s6
  $region1: #{tpu_custom_call.1} parent=0
    #allocation2 [shape = 'u8[4096]{0}', space=vmem, size = 0x1000, scoped, tag = 'input window, operand 0, single buffered']
    #allocation3 [shape = 's32[1]{0}', space=sflag, size = 0x4, scoped, tag = 'scoped memory for tpu_custom_call.1']
    #allocation4 [shape = 's32[1]{0}', space=sflag, size = 0x4, scoped, tag = 'scoped memory for tpu_custom_call.1']
    #allocation5 [shape = 'u8[4096]{0}', space=vmem, size = 0x1000, scoped, tag = 'input window, operand 1, single buffered']
    #allocation6 [shape = 's32[1]{0}', space=sflag, size = 0x4, scoped, tag = 'scoped memory for tpu_custom_call.1']
    #allocation7 [shape = 'u8[65536]{0}', space=vmem, size = 0x10000, scoped, tag = 'input window, operand 3, single buffered']
    #allocation8 [shape = 'u8[4096]{0}', space=vmem, size = 0x1000, scoped, tag = 'output window, operand 0, single buffered']
    %10 = vsyncpa [#allocation3], 0
    %11 = vsyncpa [#allocation6], 0
    %12 = vsyncpa [#allocation4], 0
    // Predicated region
    $region2: #{tpu_custom_call.1} parent=1 // pred_check
      _
    $region3: #{tpu_custom_call.1} parent=1 // pred_check_branch
      %14 = sbr.rel (0) target = $region5
    $region4: #{tpu_custom_call.1} parent=1 // pred_region
      %16 = vsyncadd [#allocation3], 0
      %s18 = sshll.u32 %s0, 4
      %s19 = int_to_ptr.hbm [resolvable:$true] %s18
      %s20 = sshll.u32 [#allocation2], 4
      %s21 = int_to_ptr.vmem [resolvable:$true] %s20
      %23 = dma.hbm_to_vmem [thread:$0]  %s19, 128, %s21, [#allocation3]
    $region5: #{tpu_custom_call.1} parent=1 // pred_fallthru
      _
    // Predicated region
    $region6: #{tpu_custom_call.1} parent=1 // pred_check
      _
    $region7: #{tpu_custom_call.1} parent=1 // pred_check_branch
      %25 = sbr.rel (0) target = $region9
    $region8: #{tpu_custom_call.1} parent=1 // pred_region
      %27 = vsyncadd [#allocation6], 0
      %s29 = sshll.u32 %s1, 4
      %s30 = int_to_ptr.hbm [resolvable:$true] %s29
      %s31 = sshll.u32 [#allocation5], 4
      %s32 = int_to_ptr.vmem [resolvable:$true] %s31
      %34 = dma.hbm_to_vmem [thread:$0]  %s30, 128, %s32, [#allocation6]
    $region9: #{tpu_custom_call.1} parent=1 // pred_fallthru
      _
    // Predicated region
    $region10: #{tpu_custom_call.1} parent=1 // pred_check
      _
    $region11: #{tpu_custom_call.1} parent=1 // pred_check_branch
      %36 = sbr.rel (0) target = $region13
    $region12: #{tpu_custom_call.1} parent=1 // pred_region
      _
    $region13: #{tpu_custom_call.1} parent=1 // pred_fallthru
      _
    // Predicated region
    $region14: #{tpu_custom_call.1} parent=1 // pred_check
      _
    $region15: #{tpu_custom_call.1} parent=1 // pred_check_branch
      %38 = sbr.rel (0) target = $region17
    $region16: #{tpu_custom_call.1} parent=1 // pred_region
      %40 = vsyncadd [#allocation6], 0
      %s41 = sshll.u32 %s3, 4
      %s42 = int_to_ptr.hbm [resolvable:$true] %s41
      %s43 = sshll.u32 [#allocation7], 4
      %s44 = int_to_ptr.vmem [resolvable:$true] %s43
      %49 = dma.hbm_to_vmem [thread:$0]  %s42, 2048, %s44, [#allocation6], 128, 128, 8
    $region17: #{tpu_custom_call.1} parent=1 // pred_fallthru
      _
    // Predicated region
    $region18: #{tpu_custom_call.1} parent=1 // pred_check
      _
    $region19: #{tpu_custom_call.1} parent=1 // pred_check_branch
      %51 = sbr.rel (0) target = $region21
    $region20: #{tpu_custom_call.1} parent=1 // pred_region
      _
    $region21: #{tpu_custom_call.1} parent=1 // pred_fallthru
      _
    // Predicated region
    $region22: #{tpu_custom_call.1} parent=1 // pred_check
      _
    $region23: #{tpu_custom_call.1} parent=1 // pred_check_branch
      %53 = sbr.rel (0) target = $region25
    $region24: #{tpu_custom_call.1} parent=1 // pred_region
      %55 = dma.done [#allocation3], 128
    $region25: #{tpu_custom_call.1} parent=1 // pred_fallthru
      _
    // Predicated region
    $region26: #{tpu_custom_call.1} parent=1 // pred_check
      _
    $region27: #{tpu_custom_call.1} parent=1 // pred_check_branch
      %57 = sbr.rel (0) target = $region29
    $region28: #{tpu_custom_call.1} parent=1 // pred_region
      %59 = dma.done [#allocation6], 128
    $region29: #{tpu_custom_call.1} parent=1 // pred_fallthru
      _
    // Predicated region
    $region30: #{tpu_custom_call.1} parent=1 // pred_check
      _
    $region31: #{tpu_custom_call.1} parent=1 // pred_check_branch
      %61 = sbr.rel (0) target = $region33
    $region32: #{tpu_custom_call.1} parent=1 // pred_region
      %63 = dma.done [#allocation6], 2048
    $region33: #{tpu_custom_call.1} parent=1 // pred_fallthru
      _
    %v64 = vld [vmem:[#allocation2] sm:$0xff]
    %v65 = vld [vmem:[#allocation5] sm:$0xff]
    %v66 = vld [vmem:[%s2] sm:$0x1]
    %v68 = vperm.slane %v66, 0
    %vm70 = vcmask 64512
    %v72 = vsel %vm70, %v64, 0
    %74 = vmatpush.msra.mxu0 0.0
    %75 = vmatpush.msra.mxu0 0.0
    %76 = vmatpush.msra.mxu0 0.0
    %77 = vmatpush.msra.mxu0 0.0
    %78 = vmatpush.msra.mxu0 0.0
    %79 = vmatpush.msra.mxu0 0.0
    %80 = vmatpush.msra.mxu0 0.0
    %81 = vmatpush.msra.mxu0 0.0
    %82 = vmatpush.msra.mxu0 0.0
    %83 = vmatpush.msra.mxu0 0.0
    %84 = vmatpush.msra.mxu0 0.0
    %85 = vmatpush.msra.mxu0 0.0
    %86 = vmatpush.msra.mxu0 0.0
    %87 = vmatpush.msra.mxu0 0.0
    %88 = vmatpush.msra.mxu0 0.0
    %89 = vmatpush.msra.mxu0 %v65
    %90 = vmatmul.f32.gmra.mxu0 %v72
    %v91 = vpop.f32.mrf.mxu0
    %v92 = vadd.f32 %v68, %v91
    %93 = vdwg.mxu0
    %v94 = vmax.f32 %v92, 0.0
    %v95 = vld [vmem:[#allocation7] sm:$0xff]
    %v96 = vld [vmem:[#allocation7 + $0x8] sm:$0xff]
    %v97 = vld [vmem:[#allocation7 + $0x10] sm:$0xff]
    %v98 = vld [vmem:[#allocation7 + $0x18] sm:$0xff]
    %v99 = vld [vmem:[#allocation7 + $0x20] sm:$0xff]
    %v100 = vld [vmem:[#allocation7 + $0x28] sm:$0xff]
    %v101 = vld [vmem:[#allocation7 + $0x30] sm:$0xff]
    %v102 = vld [vmem:[#allocation7 + $0x38] sm:$0xff]
    %v103 = vld [vmem:[#allocation7 + $0x40] sm:$0xff]
    %v104 = vld [vmem:[#allocation7 + $0x48] sm:$0xff]
    %v105 = vld [vmem:[#allocation7 + $0x50] sm:$0xff]
    %v106 = vld [vmem:[#allocation7 + $0x58] sm:$0xff]
    %v107 = vld [vmem:[#allocation7 + $0x60] sm:$0xff]
    %v108 = vld [vmem:[#allocation7 + $0x68] sm:$0xff]
    %v109 = vld [vmem:[#allocation7 + $0x70] sm:$0xff]
    %v110 = vld [vmem:[#allocation7 + $0x78] sm:$0xff]
    %v111 = vld [vmem:[%s4] sm:$0x1]
    %v113 = vperm.slane %v111, 0
    %115 = vmatpush.msra.mxu0 %v110
    %116 = vmatpush.msra.mxu0 %v109
    %117 = vmatpush.msra.mxu0 %v108
    %118 = vmatpush.msra.mxu0 %v107
    %119 = vmatpush.msra.mxu0 %v106
    %120 = vmatpush.msra.mxu0 %v105
    %121 = vmatpush.msra.mxu0 %v104
    %122 = vmatpush.msra.mxu0 %v103
    %123 = vmatpush.msra.mxu0 %v102
    %124 = vmatpush.msra.mxu0 %v101
    %125 = vmatpush.msra.mxu0 %v100
    %126 = vmatpush.msra.mxu0 %v99
    %127 = vmatpush.msra.mxu0 %v98
    %128 = vmatpush.msra.mxu0 %v97
    %129 = vmatpush.msra.mxu0 %v96
    %130 = vmatpush.msra.mxu0 %v95
    %131 = vmatmul.f32.gmra.mxu0 %v94
    %v132 = vpop.f32.mrf.mxu0
    %v133 = vadd.f32 %v113, %v132
    %134 = vdwg.mxu0
    %135 = vst [vmem:[#allocation8] sm:$0xff] %v133
    // Predicated region
    $region34: #{tpu_custom_call.1} parent=1 // pred_check
      _
    $region35: #{tpu_custom_call.1} parent=1 // pred_check_branch
      %137 = sbr.rel (0) target = $region37
    $region36: #{tpu_custom_call.1} parent=1 // pred_region
      %139 = vsyncadd [#allocation4], 0
      %s141 = sshll.u32 [#allocation8], 4
      %s142 = int_to_ptr.vmem [resolvable:$true] %s141
      %s143 = sshll.u32 %s5, 4
      %s144 = int_to_ptr.hbm [resolvable:$true] %s143
      %146 = dma.vmem_to_hbm [thread:$0]  %s142, 128, %s144, [#allocation4]
    $region37: #{tpu_custom_call.1} parent=1 // pred_fallthru
      _
    // Predicated region
    $region38: #{tpu_custom_call.1} parent=1 // pred_check
      _
    $region39: #{tpu_custom_call.1} parent=1 // pred_check_branch
      %148 = sbr.rel (0) target = $region41
    $region40: #{tpu_custom_call.1} parent=1 // pred_region
      %150 = dma.done [#allocation4], 128
    $region41: #{tpu_custom_call.1} parent=1 // pred_fallthru
      _
    %151 = vsyncpa [#allocation3], 1
    %152 = vsyncpa [#allocation6], 1
    %153 = vsyncpa [#allocation4], 1

</llo_original>
